<compile_context>
chip_gen: v5e
topology: v5e:2x2
jax: 0.10.0
libtpu: 0.0.40
codegen_flags: <defaults>
</compile_context>

<pallas_src>
import numpy as np
import jax
import jax.numpy as jnp
from jax.experimental import pallas as pl
from jax.experimental.pallas import tpu as pltpu


# ---------------------------------------------------------------------------
# Mel filterbank construction (plain numpy glue, identical to the module's
# __init__ math; deterministic, no checkpoints).
# ---------------------------------------------------------------------------
def fft_frequencies(sr, n_fft):
    return np.linspace(0, float(sr) / 2, int(1 + n_fft // 2), endpoint=True)


def hz_to_mel(frequencies, htk=False):
    frequencies = np.asanyarray(frequencies)
    if htk:
        return 2595.0 * np.log10(1.0 + frequencies / 700.0)
    f_min = 0.0
    f_sp = 200.0 / 3
    mels = (frequencies - f_min) / f_sp
    min_log_hz = 1000.0
    min_log_mel = (min_log_hz - f_min) / f_sp
    logstep = np.log(6.4) / 27.0
    if frequencies.ndim:
        log_t = frequencies >= min_log_hz
        mels[log_t] = min_log_mel + np.log(frequencies[log_t] / min_log_hz) / logstep
    elif frequencies >= min_log_hz:
        mels = min_log_mel + np.log(frequencies / min_log_hz) / logstep
    return mels


def mel_to_hz(mels, htk=False):
    mels = np.asanyarray(mels)
    if htk:
        return 700.0 * (10.0 ** (mels / 2595.0) - 1.0)
    f_min = 0.0
    f_sp = 200.0 / 3
    freqs = f_min + f_sp * mels
    min_log_hz = 1000.0
    min_log_mel = (min_log_hz - f_min) / f_sp
    logstep = np.log(6.4) / 27.0
    if mels.ndim:
        log_t = mels >= min_log_mel
        freqs[log_t] = min_log_hz * np.exp(logstep * (mels[log_t] - min_log_mel))
    elif mels >= min_log_mel:
        freqs = min_log_hz * np.exp(logstep * (mels - min_log_mel))
    return freqs


def mel_frequencies(n_mels=128, fmin=0.0, fmax=11025.0, htk=False):
    min_mel = hz_to_mel(fmin, htk=htk)
    max_mel = hz_to_mel(fmax, htk=htk)
    mels = np.linspace(min_mel, max_mel, n_mels)
    return mel_to_hz(mels, htk=htk)


def build_mel_weights(sr=44100, n_fft=1024, n_mels=128, fmin=0.0, fmax=None,
                      htk=False, norm=1, dtype=np.float32):
    """Exactly the weight construction done in melspectrogram.__init__."""
    if fmax is None:
        fmax = float(sr) / 2
    n_mels = int(n_mels)
    weights = np.zeros((n_mels, int(1 + n_fft // 2)), dtype=dtype)
    fftfreqs = fft_frequencies(sr=sr, n_fft=n_fft)
    mel_f = mel_frequencies(n_mels + 2, fmin=fmin, fmax=fmax, htk=htk)
    fdiff = np.diff(mel_f)
    ramps = np.subtract.outer(mel_f, fftfreqs)
    for i in range(n_mels):
        lower = -ramps[i] / fdiff[i]
        upper = ramps[i + 2] / fdiff[i + 1]
        weights[i] = np.maximum(0, np.minimum(lower, upper))
    if norm == 1:
        enorm = 2.0 / (mel_f[2:n_mels + 2] - mel_f[:n_mels])
        weights *= enorm[:, np.newaxis]
    return weights


# ---------------------------------------------------------------------------
# Pallas kernel: one (M, TN) output tile per grid step:
#   out[b, :, t_tile] = weights(M, F) @ spec[b, :, t_tile](F, TN)
# ---------------------------------------------------------------------------
def _mel_matmul_kernel(w_ref, s_ref, o_ref):
    # w_ref: (M, F) resident filterbank; s_ref: (F, TN); o_ref: (M, TN)
    o_ref[...] = jnp.dot(
        w_ref[...], s_ref[...], preferred_element_type=jnp.float32
    ).astype(o_ref.dtype)


def _round_up(x, m):
    return ((x + m - 1) // m) * m


def _cdiv(a, b):
    return (a + b - 1) // b


def _default_vmem_limit_bytes():
    """Generation-aware VMEM budget: ~60% of per-core VMEM (falls back to a
    conservative 64 MiB capacity, i.e. v7x, if the query is unavailable)."""
    cap = None
    try:
        info = pltpu.get_tpu_info()
        cap = getattr(info, "vmem_capacity_bytes", None)
    except Exception:
        cap = None
    if not cap:
        cap = 64 * 1024 * 1024
    return int(cap * 0.6)


def _choose_tn(B, F, M, T, tn_request, vmem_budget):
    """Pick a lane-dense time-tile width.

    - multiple of 128 (unmasked vector stores except the one ragged last tile)
    - clamped so (2x spec tile + 2x out tile + weights) fits ~75% of the budget
    - shrunk if the grid would have too few steps to feed the pipeline / both
      v7x TensorCores.
    """
    tn = min(_round_up(tn_request, 128), _round_up(T, 128))
    col_bytes = 4 * 2 * (_round_up(F, 8) + _round_up(M, 8))   # double-buffered in+out
    w_bytes = 4 * _round_up(M, 8) * _round_up(F, 128)
    avail = int(vmem_budget * 0.75) - w_bytes
    if avail > 0:
        tn_cap = max(128, (avail // col_bytes) // 128 * 128)
        tn = max(128, min(tn, tn_cap))
    # Guarantee >= ~4 grid steps when possible (megacore sharding + DMA overlap).
    while B * _cdiv(T, tn) < 4 and tn > 128:
        tn = max(128, _round_up(tn // 2, 128))
    return tn


def melspectrogram_forward(spectrogram, weights, *, tn=4096, vmem_limit_bytes=None):
    """spectrogram: (B, F, T) float32 ; weights: (M, F) float32 -> (B, M, T)."""
    B, F, T = spectrogram.shape
    M, Fw = weights.shape
    assert F == Fw, "frequency dims must match"

    if vmem_limit_bytes is None:
        vmem_limit_bytes = _default_vmem_limit_bytes()

    TN = _choose_tn(B, F, M, T, tn, vmem_limit_bytes)
    grid = (B, _cdiv(T, TN))

    out = pl.pallas_call(
        _mel_matmul_kernel,
        out_shape=jax.ShapeDtypeStruct((B, M, T), spectrogram.dtype),
        grid_spec=pl.GridSpec(
            grid=grid,
            in_specs=[
                # Filterbank: constant index_map -> resident in VMEM, fetched once.
                # Full-array block, so no padding is needed even if M/F are ragged.
                pl.BlockSpec((M, F), lambda b, t: (0, 0)),
                # One (F, TN) time-tile of one batch per grid step; full F block
                # (legal for non-multiple-of-8 F), ragged last T tile masked by Pallas.
                pl.BlockSpec((None, F, TN), lambda b, t: (b, 0, t)),
            ],
            out_specs=pl.BlockSpec((None, M, TN), lambda b, t: (b, 0, t)),
        ),
        compiler_params=pltpu.CompilerParams(
            dimension_semantics=("parallel", "parallel"),
            vmem_limit_bytes=vmem_limit_bytes,
        ),
        cost_estimate=pl.CostEstimate(
            flops=2 * B * M * F * T,
            transcendentals=0,
            bytes_accessed=4 * (B * F * T + M * F + B * M * T),
        ),
    )(weights, spectrogram)

    return out


if __name__ == "__main__":
    # Small, consistent shapes: sr=8000, n_fft=256 -> F = 1 + 256//2 = 129 freq bins.
    # T=200 deliberately exercises the ragged last time tile (masked by Pallas).
    sr, n_fft, n_mels = 8000, 256, 64
    B, T = 2, 200

    weights_np = build_mel_weights(sr=sr, n_fft=n_fft, n_mels=n_mels)  # (64, 129)
    weights = jnp.asarray(weights_np, dtype=jnp.float32)

    key = jax.random.PRNGKey(0)
    # A (power) spectrogram is non-negative; use |normal| for determinism.
    spec = jnp.abs(jax.random.normal(key, (B, 1 + n_fft // 2, T), dtype=jnp.float32))

    out = melspectrogram_forward(spec, weights)
    out = jax.block_until_ready(out)

    # Reference check (pure JAX): same contraction as F.conv2d with (F,1) kernel.
    ref = jnp.einsum("mf,bft->bmt", weights, spec)
    assert out.shape == (B, n_mels, T)
    np.testing.assert_allclose(np.asarray(out), np.asarray(ref), rtol=1e-5, atol=1e-5)

    print("KERNEL_OK")
</pallas_src>

<mosaic_0001>
module attributes {stable_mosaic.version = 11 : i64} {
  func.func @_mel_matmul_kernel(%arg0: i32, %arg1: i32, %arg2: memref<64x129xf32, #tpu.memory_space<vmem>>, %arg3: memref<1x129x128xf32, #tpu.memory_space<vmem>>, %arg4: memref<1x64x128xf32, #tpu.memory_space<vmem>>) attributes {dimension_semantics = [#tpu.dimension_semantics<parallel>, #tpu.dimension_semantics<parallel>], iteration_bounds = array<i64: 2, 2>, scalar_prefetch = 0 : i64, scratch_operands = 0 : i64, tpu.core_type = #tpu.core_type<tc>, window_params = [{pipeline_mode = #tpu.pipeline_mode<synchronous>, transform_indices = @transform_0, window_bounds = array<i64: 64, 129>}, {transform_indices = @transform_1, window_bounds = array<i64: 1, 129, 128>}, {transform_indices = @transform_2, window_bounds = array<i64: 1, 64, 128>}]} {
    %c0 = arith.constant 0 : index
    %c0_0 = arith.constant 0 : index
    %0 = vector.load %arg2[%c0, %c0_0] : memref<64x129xf32, #tpu.memory_space<vmem>>, vector<64x129xf32>
    %c0_1 = arith.constant 0 : index
    %c0_2 = arith.constant 0 : index
    %c0_3 = arith.constant 0 : index
    %1 = vector.load %arg3[%c0_1, %c0_2, %c0_3] : memref<1x129x128xf32, #tpu.memory_space<vmem>>, vector<1x129x128xf32>
    %2 = vector.shape_cast %1 : vector<1x129x128xf32> to vector<129x128xf32>
    %cst = arith.constant dense<0.000000e+00> : vector<64x128xf32>
    %3 = tpu.matmul %0, %2, %cst {dimension_numbers = #tpu.dot_dimension_numbers<[1], [0], [0], [1], [0, 0, 1, 1], [], []>} : vector<64x129xf32>, vector<129x128xf32>, vector<64x128xf32> -> vector<64x128xf32>
    %c0_4 = arith.constant 0 : index
    %c0_5 = arith.constant 0 : index
    %c0_6 = arith.constant 0 : index
    %4 = vector.load %arg4[%c0_4, %c0_5, %c0_6] : memref<1x64x128xf32, #tpu.memory_space<vmem>>, vector<1x64x128xf32>
    %5 = vector.shape_cast %4 : vector<1x64x128xf32> to vector<64x128xf32>
    %6 = vector.shape_cast %3 : vector<64x128xf32> to vector<1x64x128xf32>
    tpu.vector_store %arg4[%c0_4, %c0_5, %c0_6], %6 {strides = array<i32>} : memref<1x64x128xf32, #tpu.memory_space<vmem>>, vector<1x64x128xf32>,
    return
  }
  func.func @transform_0(%arg0: i32, %arg1: i32) -> (i32, i32) {
    %c0_i32 = arith.constant 0 : i32
    %c0_i32_0 = arith.constant 0 : i32
    %c0_i32_1 = arith.constant 0 : i32
    return %c0_i32, %c0_i32_0 : i32, i32
  }
  func.func @transform_1(%arg0: i32, %arg1: i32) -> (i32, i32, i32) {
    %c0_i32 = arith.constant 0 : i32
    %c0_i32_0 = arith.constant 0 : i32
    return %arg0, %c0_i32, %arg1 : i32, i32, i32
  }
  func.func @transform_2(%arg0: i32, %arg1: i32) -> (i32, i32, i32) {
    %c0_i32 = arith.constant 0 : i32
    %c0_i32_0 = arith.constant 0 : i32
    return %arg0, %c0_i32, %arg1 : i32, i32, i32
  }
}

</mosaic_0001>

<llo_original>
// kernel: tpu_custom_call.1
$region0: #{tpu_custom_call.1}
  #allocation0 [shape = 'u32[]', space=smem, size = 0x4, offset = 0x4, fixed_abs, tag = 'smem constant byte address 0x4 - core index']
  #allocation1 [shape = 'u32[72,128]{1,0:T(1,128)}', space=vmem, size = 0x9000, scoped, tag = 'internal scratch']
  %s0 = inlined_call_operand.vmem [shape: f32[64,129], index: 0, kind: input, shape index: {}]
  %s1 = inlined_call_operand.vmem [shape: f32[2,129,200], index: 1, kind: input, shape index: {}]
  %s2 = inlined_call_operand.hbm [shape: f32[2,64,200], index: 2, kind: output, shape index: {}]
  %s3 = sld [smem:[#allocation0]]
  $region79: #{tpu_custom_call.1} parent=0
    _
  %s5 = ssub.s32 1, %s3
  %s6 = scalar_select 0, %s5, %s3
  $region1: #{tpu_custom_call.1} parent=0
    #allocation2 [shape = 'u8[139264]{0}', space=vmem, size = 0x22000, scoped, tag = 'input window, operand 1']
    #allocation3 [shape = 'u8[65536]{0}', space=vmem, size = 0x10000, scoped, tag = 'output window, operand 0']
    #allocation4 [shape = 's32[2]{0}', space=sflag, size = 0x8, scoped, tag = 'scoped memory for tpu_custom_call.1']
    %7 = vsyncpa [#allocation4], 0
    %s8 = scalar_lea.sflag [#allocation4], 1
    %9 = vsyncpa %s8, 0
    loop: start=0, step=1, limit=6
    $region2: #{tpu_custom_call.1} parent=1 // loop_pre_header
      _
    $region3: #{tpu_custom_call.1} parent=1 // loop_header
      %s11 = sphi 0, %s15
      %p12 = scmp.ge.s32.totalorder %s11, 6
      %s18 = sphi 0, %s30
      %s19 = sphi 0, %s26
      %s20 = sphi 0, %s18
      %s21 = sphi 0, %s19
      %s22 = sphi 0, %s20
      %s23 = sphi 0, %s21
      %s31 = sphi 0, %s31
      %s33 = sphi 0, %s31
      %s34 = sphi 0, %s33
      %s48 = sphi 0, %s34
      %s56 = sphi 0, %s58
      %s59 = sphi 0, %s56
      %s60 = sphi 0, %s59
      %s76 = sphi 0, %s60
      %s84 = sphi 0, %s86
      %s87 = sphi 0, %s84
      %s88 = sphi 0, %s87
      %s104 = sphi 0, %s88
    $region4: #{tpu_custom_call.1} parent=1 // loop_header_branch
      %14 = sbr.rel (%p12) target = $region8
    $region5: #{tpu_custom_call.1} parent=1 // loop_body
      %s16 = ssub.s32 %s11, 1
      %s17 = ssub.s32 %s11, 2
      %s24 = sadd.s32 1, %s19
      %p25 = scmp.ge.s32.totalorder %s24, 2
      %s26 = scalar_select %p25, 0, %s24
      %s27 = sadd.s32 1, %s18
      %s28 = scalar_select %p25, %s27, %s18
      %p29 = scmp.ge.s32.totalorder %s28, 2
      %s30 = scalar_select %p29, 0, %s28
      %s32 = sadd.s32 %s31, 1
      %p35 = scmp.eq.s32.totalorder %s11, 3
      %p36 = scmp.ne.s32.totalorder %s31, %s33
      %p37 = scmp.eq.s32.totalorder %s11, 0
      %p38 = por %p36, %p37
      %p39 = scmp.ne.s32.totalorder %s31, %s33
      %p40 = scmp.eq.s32.totalorder %s16, 3
      %p41 = por %p39, %p40
      %p42 = scmp.ne.s32.totalorder %s33, %s34
      %p43 = scmp.eq.s32.totalorder %s16, 0
      %p44 = por %p42, %p43
      %p45 = scmp.ne.s32.totalorder %s33, %s34
      %p46 = scmp.eq.s32.totalorder %s17, 3
      %p47 = por %p45, %p46
      %p49 = scmp.ne.s32.totalorder %s34, %s48
      %p50 = scmp.eq.s32.totalorder %s17, 0
      %p51 = por %p49, %p50
      %s52 = ssub.s32 %s18, %s30
      %s53 = ssub.s32 %s19, %s26
      %s54 = sor.u32 %s52, %s53
      %p55 = scmp.eq.s32.totalorder %s54, 0
      %s57 = sadd.s32 %s56, 1
      %s58 = scalar_select %p55, %s56, %s57
      %p61 = pneg %p55
      %p62 = scmp.eq.s32.totalorder %s11, 3
      %p63 = por %p61, %p62
      %p64 = scmp.ne.s32.totalorder %s56, %s59
      %p65 = scmp.eq.s32.totalorder %s11, 0
      %p66 = por %p64, %p65
      %p67 = scmp.ne.s32.totalorder %s56, %s59
      %p68 = scmp.eq.s32.totalorder %s16, 3
      %p69 = por %p67, %p68
      %p70 = scmp.ne.s32.totalorder %s59, %s60
      %p71 = scmp.eq.s32.totalorder %s16, 0
      %p72 = por %p70, %p71
      %p73 = scmp.ne.s32.totalorder %s59, %s60
      %p74 = scmp.eq.s32.totalorder %s17, 3
      %p75 = por %p73, %p74
      %p77 = scmp.ne.s32.totalorder %s60, %s76
      %p78 = scmp.eq.s32.totalorder %s17, 0
      %p79 = por %p77, %p78
      %s80 = ssub.s32 %s18, %s30
      %s81 = ssub.s32 %s19, %s26
      %s82 = sor.u32 %s80, %s81
      %p83 = scmp.eq.s32.totalorder %s82, 0
      %s85 = sadd.s32 %s84, 1
      %s86 = scalar_select %p83, %s84, %s85
      %p89 = pneg %p83
      %p90 = scmp.eq.s32.totalorder %s11, 3
      %p91 = por %p89, %p90
      %p92 = scmp.ne.s32.totalorder %s84, %s87
      %p93 = scmp.eq.s32.totalorder %s11, 0
      %p94 = por %p92, %p93
      %p95 = scmp.ne.s32.totalorder %s84, %s87
      %p96 = scmp.eq.s32.totalorder %s16, 3
      %p97 = por %p95, %p96
      %p98 = scmp.ne.s32.totalorder %s87, %s88
      %p99 = scmp.eq.s32.totalorder %s16, 0
      %p100 = por %p98, %p99
      %p101 = scmp.ne.s32.totalorder %s87, %s88
      %p102 = scmp.eq.s32.totalorder %s17, 3
      %p103 = por %p101, %p102
      %p105 = scmp.ne.s32.totalorder %s88, %s104
      %p106 = scmp.eq.s32.totalorder %s17, 0
      %p107 = por %p105, %p106
      %p108 = scmp.le.s32.totalorder 1, %s11
      %p109 = scmp.lt.s32.totalorder %s11, 5
      %p110 = pnand %p108, %p109
      %p111 = pneg %p110
      // Predicated region
      $region9: #{tpu_custom_call.1} parent=5 // pred_check
        _
      $region10: #{tpu_custom_call.1} parent=5 // pred_check_branch
        %113 = sbr.rel (%p110) target = $region12
      $region11: #{tpu_custom_call.1} parent=5 // pred_region
        %s114 = ssub.s32 %s11, 1
        // Predicated region
        $region13: #{tpu_custom_call.1} parent=11 // pred_check
          %p115 = pneg %p44
        $region14: #{tpu_custom_call.1} parent=11 // pred_check_branch
          %117 = sbr.rel (%p115) target = $region16
        $region15: #{tpu_custom_call.1} parent=11 // pred_region
          _
        $region16: #{tpu_custom_call.1} parent=11 // pred_fallthru
          _
      $region12: #{tpu_custom_call.1} parent=5 // pred_fallthru
        _
      %p118 = scmp.lt.s32.totalorder %s11, 4
      // Predicated region
      $region17: #{tpu_custom_call.1} parent=5 // pred_check
        %p119 = pneg %p118
      $region18: #{tpu_custom_call.1} parent=5 // pred_check_branch
        %121 = sbr.rel (%p119) target = $region20
      $region19: #{tpu_custom_call.1} parent=5 // pred_region
        // Predicated region
        $region21: #{tpu_custom_call.1} parent=19 // pred_check
          %p122 = pneg %p66
        $region22: #{tpu_custom_call.1} parent=19 // pred_check_branch
          %124 = sbr.rel (%p122) target = $region24
        $region23: #{tpu_custom_call.1} parent=19 // pred_region
          %s125 = sand.u32 %s56, 1
          %s126 = sand.u32 %s56, 1
          %s127 = smul.addr %s126, 136
          %s128 = scalar_lea.vmem [#allocation2], %s127
          %s129 = smul.addr %s18, 34
          %s130 = sadd.s32 %s19, %s129
          %s131 = smul.addr %s130, 8
          %s132 = scalar_lea.vmem %s1, %s131
          // Predicated region
          $region25: #{tpu_custom_call.1} parent=23 // pred_check
            _
          $region26: #{tpu_custom_call.1} parent=23 // pred_check_branch
            %134 = sbr.rel (0) target = $region28
          $region27: #{tpu_custom_call.1} parent=23 // pred_region
            // Predicated region
            $region29: #{tpu_custom_call.1} parent=27 // pred_check
              _
            $region30: #{tpu_custom_call.1} parent=27 // pred_check_branch
              %136 = sbr.rel (0) target = $region32
            $region31: #{tpu_custom_call.1} parent=27 // pred_region
              // Predicated region
              $region44: #{tpu_custom_call.1} parent=31 // pred_check
                _
              $region45: #{tpu_custom_call.1} parent=31 // pred_check_branch
                %184 = sbr.rel (0) target = $region47
              $region46: #{tpu_custom_call.1} parent=31 // pred_region
                loop: start=0, step=1, limit=1
                $region48: #{tpu_custom_call.1} parent=46 // loop_pre_header
                  _
                $region49: #{tpu_custom_call.1} parent=46 // loop_header
                  %s186 = sphi 0, %s190
                  %p187 = scmp.ge.s32.totalorder %s186, 1
                  %s191 = sphi %s132, %s132
                  %s192 = sphi %s128, %s128
                $region50: #{tpu_custom_call.1} parent=46 // loop_header_branch
                  %189 = sbr.rel (%p187) target = $region54
                $region51: #{tpu_custom_call.1} parent=46 // loop_body
                  %v193 = vld [vmem:[%s191] sm:$0xff]
                  %194 = vst [vmem:[%s192] sm:$0xff] %v193
                  %v195 = vld [vmem:[%s191 + $0x10] sm:$0xff]
                  %196 = vst [vmem:[%s192 + $0x8] sm:$0xff] %v195
                  %v197 = vld [vmem:[%s191 + $0x20] sm:$0xff]
                  %198 = vst [vmem:[%s192 + $0x10] sm:$0xff] %v197
                  %v199 = vld [vmem:[%s191 + $0x30] sm:$0xff]
                  %200 = vst [vmem:[%s192 + $0x18] sm:$0xff] %v199
                  %v201 = vld [vmem:[%s191 + $0x40] sm:$0xff]
                  %202 = vst [vmem:[%s192 + $0x20] sm:$0xff] %v201
                  %v203 = vld [vmem:[%s191 + $0x50] sm:$0xff]
                  %204 = vst [vmem:[%s192 + $0x28] sm:$0xff] %v203
                  %v205 = vld [vmem:[%s191 + $0x60] sm:$0xff]
                  %206 = vst [vmem:[%s192 + $0x30] sm:$0xff] %v205
                  %v207 = vld [vmem:[%s191 + $0x70] sm:$0xff]
                  %208 = vst [vmem:[%s192 + $0x38] sm:$0xff] %v207
                  %v209 = vld [vmem:[%s191 + $0x80] sm:$0xff]
                  %210 = vst [vmem:[%s192 + $0x40] sm:$0xff] %v209
                  %v211 = vld [vmem:[%s191 + $0x90] sm:$0xff]
                  %212 = vst [vmem:[%s192 + $0x48] sm:$0xff] %v211
                  %v213 = vld [vmem:[%s191 + $0xa0] sm:$0xff]
                  %214 = vst [vmem:[%s192 + $0x50] sm:$0xff] %v213
                  %v215 = vld [vmem:[%s191 + $0xb0] sm:$0xff]
                  %216 = vst [vmem:[%s192 + $0x58] sm:$0xff] %v215
                  %v217 = vld [vmem:[%s191 + $0xc0] sm:$0xff]
                  %218 = vst [vmem:[%s192 + $0x60] sm:$0xff] %v217
                  %v219 = vld [vmem:[%s191 + $0xd0] sm:$0xff]
                  %220 = vst [vmem:[%s192 + $0x68] sm:$0xff] %v219
                  %v221 = vld [vmem:[%s191 + $0xe0] sm:$0xff]
                  %222 = vst [vmem:[%s192 + $0x70] sm:$0xff] %v221
                  %v223 = vld [vmem:[%s191 + $0xf0] sm:$0xff]
                  %224 = vst [vmem:[%s192 + $0x78] sm:$0xff] %v223
                  %v225 = vld [vmem:[%s191 + $0x100] sm:$0xff]
                  %226 = vst [vmem:[%s192 + $0x80] sm:$0xff] %v225
                $region52: #{tpu_custom_call.1} parent=46 // loop_footer
                  %s190 = sadd.s32 1, %s186
                $region53: #{tpu_custom_call.1} parent=46 // loop_footer_branch
                  %185 = sbr.rel target = $region49
                $region54: #{tpu_custom_call.1} parent=46 // loop_exit
                  _
              $region47: #{tpu_custom_call.1} parent=31 // pred_fallthru
                _
              // Predicated region
              $region55: #{tpu_custom_call.1} parent=31 // pred_check
                _
              $region56: #{tpu_custom_call.1} parent=31 // pred_check_branch
                %228 = sbr.rel target = $region58
              $region57: #{tpu_custom_call.1} parent=31 // pred_region
                _
              $region58: #{tpu_custom_call.1} parent=31 // pred_fallthru
                _
            $region32: #{tpu_custom_call.1} parent=27 // pred_fallthru
              _
            // Predicated region
            $region33: #{tpu_custom_call.1} parent=27 // pred_check
              _
            $region34: #{tpu_custom_call.1} parent=27 // pred_check_branch
              %138 = sbr.rel target = $region36
            $region35: #{tpu_custom_call.1} parent=27 // pred_region
              %s140 = ssub.s32 256, 1
              loop: start=0, step=1, limit=1
              $region37: #{tpu_custom_call.1} parent=35 // loop_pre_header
                _
              $region38: #{tpu_custom_call.1} parent=35 // loop_header
                %s142 = sphi 0, %s146
                %p143 = scmp.ge.s32.totalorder %s142, 1
                %s147 = sphi %s132, %s132
                %s148 = sphi %s128, %s128
              $region39: #{tpu_custom_call.1} parent=35 // loop_header_branch
                %145 = sbr.rel (%p143) target = $region43
              $region40: #{tpu_custom_call.1} parent=35 // loop_body
                %v149 = vld [vmem:[%s147] sm:%s140]
                %150 = vst [vmem:[%s148] sm:%s140] %v149
                %v151 = vld [vmem:[%s147 + $0x10] sm:%s140]
                %152 = vst [vmem:[%s148 + $0x8] sm:%s140] %v151
                %v153 = vld [vmem:[%s147 + $0x20] sm:%s140]
                %154 = vst [vmem:[%s148 + $0x10] sm:%s140] %v153
                %v155 = vld [vmem:[%s147 + $0x30] sm:%s140]
                %156 = vst [vmem:[%s148 + $0x18] sm:%s140] %v155
                %v157 = vld [vmem:[%s147 + $0x40] sm:%s140]
                %158 = vst [vmem:[%s148 + $0x20] sm:%s140] %v157
                %v159 = vld [vmem:[%s147 + $0x50] sm:%s140]
                %160 = vst [vmem:[%s148 + $0x28] sm:%s140] %v159
                %v161 = vld [vmem:[%s147 + $0x60] sm:%s140]
                %162 = vst [vmem:[%s148 + $0x30] sm:%s140] %v161
                %v163 = vld [vmem:[%s147 + $0x70] sm:%s140]
                %164 = vst [vmem:[%s148 + $0x38] sm:%s140] %v163
                %v165 = vld [vmem:[%s147 + $0x80] sm:%s140]
                %166 = vst [vmem:[%s148 + $0x40] sm:%s140] %v165
                %v167 = vld [vmem:[%s147 + $0x90] sm:%s140]
                %168 = vst [vmem:[%s148 + $0x48] sm:%s140] %v167
                %v169 = vld [vmem:[%s147 + $0xa0] sm:%s140]
                %170 = vst [vmem:[%s148 + $0x50] sm:%s140] %v169
                %v171 = vld [vmem:[%s147 + $0xb0] sm:%s140]
                %172 = vst [vmem:[%s148 + $0x58] sm:%s140] %v171
                %v173 = vld [vmem:[%s147 + $0xc0] sm:%s140]
                %174 = vst [vmem:[%s148 + $0x60] sm:%s140] %v173
                %v175 = vld [vmem:[%s147 + $0xd0] sm:%s140]
                %176 = vst [vmem:[%s148 + $0x68] sm:%s140] %v175
                %v177 = vld [vmem:[%s147 + $0xe0] sm:%s140]
                %178 = vst [vmem:[%s148 + $0x70] sm:%s140] %v177
                %v179 = vld [vmem:[%s147 + $0xf0] sm:%s140]
                %180 = vst [vmem:[%s148 + $0x78] sm:%s140] %v179
                %v181 = vld [vmem:[%s147 + $0x100] sm:%s140]
                %182 = vst [vmem:[%s148 + $0x80] sm:%s140] %v181
              $region41: #{tpu_custom_call.1} parent=35 // loop_footer
                %s146 = sadd.s32 1, %s142
              $region42: #{tpu_custom_call.1} parent=35 // loop_footer_branch
                %141 = sbr.rel target = $region38
              $region43: #{tpu_custom_call.1} parent=35 // loop_exit
                _
            $region36: #{tpu_custom_call.1} parent=27 // pred_fallthru
              _
          $region28: #{tpu_custom_call.1} parent=23 // pred_fallthru
            _
          %229 = vnop
        $region24: #{tpu_custom_call.1} parent=19 // pred_fallthru
          _
      $region20: #{tpu_custom_call.1} parent=5 // pred_fallthru
        _
      %p230 = scmp.le.s32.totalorder 1, %s11
      %p231 = scmp.lt.s32.totalorder %s11, 5
      %p232 = pnand %p230, %p231
      %p233 = pneg %p232
      // Predicated region
      $region59: #{tpu_custom_call.1} parent=5 // pred_check
        _
      $region60: #{tpu_custom_call.1} parent=5 // pred_check_branch
        %235 = sbr.rel (%p232) target = $region62
      $region61: #{tpu_custom_call.1} parent=5 // pred_region
        %s236 = ssub.s32 %s11, 1
        %s237 = sand.u32 %s59, 1
        %s238 = sand.u32 %s59, 1
        %s239 = smul.addr %s238, 136
        %s240 = scalar_lea.vmem [#allocation2], %s239
        // Predicated region
        $region63: #{tpu_custom_call.1} parent=61 // pred_check
          %p241 = pneg %p72
        $region64: #{tpu_custom_call.1} parent=61 // pred_check_branch
          %243 = sbr.rel (%p241) target = $region66
        $region65: #{tpu_custom_call.1} parent=61 // pred_region
          _
        $region66: #{tpu_custom_call.1} parent=61 // pred_fallthru
          _
        %p244 = pneg %p44
        %p245 = pneg %p41
        %s246 = sand.u32 %s59, 1
        %s247 = sand.u32 %s59, 1
        %s248 = smul.addr %s247, 136
        %s249 = scalar_lea.vmem [#allocation2], %s248
        %p250 = pneg %p72
        %p251 = pneg %p69
        %p252 = pneg %p100
        %p253 = pneg %p97
        %s254 = sand.u32 %s87, 1
        %s255 = scalar_lea.sflag [#allocation4], %s254
        %s256 = sand.u32 %s87, 1
        %s257 = smul.addr %s256, 64
        %s258 = scalar_lea.vmem [#allocation3], %s257
        %v259 = vld [vmem:[%s0] sm:$0xff]
        %v260 = vld [vmem:[%s0 + $0x8] sm:$0xff]
        %v261 = vld [vmem:[%s0 + $0x10] sm:$0xff]
        %v262 = vld [vmem:[%s0 + $0x18] sm:$0xff]
        %v263 = vld [vmem:[%s0 + $0x20] sm:$0xff]
        %v264 = vld [vmem:[%s0 + $0x28] sm:$0xff]
        %v265 = vld [vmem:[%s0 + $0x30] sm:$0xff]
        %v266 = vld [vmem:[%s0 + $0x38] sm:$0xff]
        %v267 = vld [vmem:[%s0 + $0x40] sm:$0xff]
        %v268 = vld [vmem:[%s0 + $0x48] sm:$0xff]
        %v269 = vld [vmem:[%s0 + $0x50] sm:$0xff]
        %v270 = vld [vmem:[%s0 + $0x58] sm:$0xff]
        %v271 = vld [vmem:[%s0 + $0x60] sm:$0xff]
        %v272 = vld [vmem:[%s0 + $0x68] sm:$0xff]
        %v273 = vld [vmem:[%s0 + $0x70] sm:$0xff]
        %v274 = vld [vmem:[%s0 + $0x78] sm:$0xff]
        %v275 = vld [vmem:[%s240] sm:$0xff]
        %v276 = vld [vmem:[%s240 + $0x8] sm:$0xff]
        %v277 = vld [vmem:[%s240 + $0x10] sm:$0xff]
        %v278 = vld [vmem:[%s240 + $0x18] sm:$0xff]
        %v279 = vld [vmem:[%s240 + $0x20] sm:$0xff]
        %v280 = vld [vmem:[%s240 + $0x28] sm:$0xff]
        %v281 = vld [vmem:[%s240 + $0x30] sm:$0xff]
        %v282 = vld [vmem:[%s240 + $0x38] sm:$0xff]
        %v283 = vld [vmem:[%s240 + $0x40] sm:$0xff]
        %v284 = vld [vmem:[%s240 + $0x48] sm:$0xff]
        %v285 = vld [vmem:[%s240 + $0x50] sm:$0xff]
        %v286 = vld [vmem:[%s240 + $0x58] sm:$0xff]
        %v287 = vld [vmem:[%s240 + $0x60] sm:$0xff]
        %v288 = vld [vmem:[%s240 + $0x68] sm:$0xff]
        %v289 = vld [vmem:[%s240 + $0x70] sm:$0xff]
        %v290 = vld [vmem:[%s240 + $0x78] sm:$0xff]
        %v291 = vld [vmem:[%s240 + $0x80] sm:$0x1]
        %vm292 = vcmask 7168
        %v294 = vsel %vm292, %v260, 0
        %v297 = vsel %vm292, %v262, 0
        %v300 = vsel %vm292, %v264, 0
        %v303 = vsel %vm292, %v266, 0
        %v306 = vsel %vm292, %v268, 0
        %v309 = vsel %vm292, %v270, 0
        %v312 = vsel %vm292, %v272, 0
        %v315 = vsel %vm292, %v274, 0
        %vm317 = vcmask 1040384
        %v319 = vsel %vm317, %v291, 0
        %321 = vmatpush.msra.mxu0 %v290
        %322 = vmatpush.msra.mxu0 %v289
        %323 = vmatpush.msra.mxu0 %v288
        %324 = vmatpush.msra.mxu0 %v287
        %325 = vmatpush.msra.mxu0 %v286
        %326 = vmatpush.msra.mxu0 %v285
        %327 = vmatpush.msra.mxu0 %v284
        %328 = vmatpush.msra.mxu0 %v283
        %329 = vmatpush.msra.mxu0 %v282
        %330 = vmatpush.msra.mxu0 %v281
        %331 = vmatpush.msra.mxu0 %v280
        %332 = vmatpush.msra.mxu0 %v279
        %333 = vmatpush.msra.mxu0 %v278
        %334 = vmatpush.msra.mxu0 %v277
        %335 = vmatpush.msra.mxu0 %v276
        %336 = vmatpush.msra.mxu0 %v275
        %337 = vmatmul.f32.gmra.mxu0 %v259
        %v338 = vpop.f32.mrf.mxu0
        %v339 = vadd.f32 0.0, %v338
        %340 = vmatmul.f32.gmra.mxu0 %v261
        %v341 = vpop.f32.mrf.mxu0
        %v342 = vadd.f32 0.0, %v341
        %343 = vmatmul.f32.gmra.mxu0 %v263
        %v344 = vpop.f32.mrf.mxu0
        %v345 = vadd.f32 0.0, %v344
        %346 = vmatmul.f32.gmra.mxu0 %v265
        %v347 = vpop.f32.mrf.mxu0
        %v348 = vadd.f32 0.0, %v347
        %349 = vmatmul.f32.gmra.mxu0 %v267
        %v350 = vpop.f32.mrf.mxu0
        %v351 = vadd.f32 0.0, %v350
        %352 = vmatmul.f32.gmra.mxu0 %v269
        %v353 = vpop.f32.mrf.mxu0
        %v354 = vadd.f32 0.0, %v353
        %355 = vmatmul.f32.gmra.mxu0 %v271
        %v356 = vpop.f32.mrf.mxu0
        %v357 = vadd.f32 0.0, %v356
        %358 = vmatmul.f32.gmra.mxu0 %v273
        %v359 = vpop.f32.mrf.mxu0
        %v360 = vadd.f32 0.0, %v359
        %361 = vdwg.mxu0
        %362 = vmatpush.msra.mxu0 0.0
        %363 = vmatpush.msra.mxu0 0.0
        %364 = vmatpush.msra.mxu0 0.0
        %365 = vmatpush.msra.mxu0 0.0
        %366 = vmatpush.msra.mxu0 0.0
        %367 = vmatpush.msra.mxu0 0.0
        %368 = vmatpush.msra.mxu0 0.0
        %369 = vmatpush.msra.mxu0 0.0
        %370 = vmatpush.msra.mxu0 0.0
        %371 = vmatpush.msra.mxu0 0.0
        %372 = vmatpush.msra.mxu0 0.0
        %373 = vmatpush.msra.mxu0 0.0
        %374 = vmatpush.msra.mxu0 0.0
        %375 = vmatpush.msra.mxu0 0.0
        %376 = vmatpush.msra.mxu0 0.0
        %377 = vmatpush.msra.mxu0 %v319
        %378 = vmatmul.f32.gmra.mxu0 %v294
        %v379 = vpop.f32.mrf.mxu0
        %v380 = vadd.f32 %v339, %v379
        %381 = vmatmul.f32.gmra.mxu0 %v297
        %v382 = vpop.f32.mrf.mxu0
        %v383 = vadd.f32 %v342, %v382
        %384 = vmatmul.f32.gmra.mxu0 %v300
        %v385 = vpop.f32.mrf.mxu0
        %v386 = vadd.f32 %v345, %v385
        %387 = vmatmul.f32.gmra.mxu0 %v303
        %v388 = vpop.f32.mrf.mxu0
        %v389 = vadd.f32 %v348, %v388
        %390 = vmatmul.f32.gmra.mxu0 %v306
        %v391 = vpop.f32.mrf.mxu0
        %v392 = vadd.f32 %v351, %v391
        %393 = vmatmul.f32.gmra.mxu0 %v309
        %v394 = vpop.f32.mrf.mxu0
        %v395 = vadd.f32 %v354, %v394
        %396 = vmatmul.f32.gmra.mxu0 %v312
        %v397 = vpop.f32.mrf.mxu0
        %v398 = vadd.f32 %v357, %v397
        %399 = vmatmul.f32.gmra.mxu0 %v315
        %v400 = vpop.f32.mrf.mxu0
        %v401 = vadd.f32 %v360, %v400
        %402 = vdwg.mxu0
        %403 = vst [vmem:[%s258] sm:$0xff] %v380
        %404 = vst [vmem:[%s258 + $0x8] sm:$0xff] %v383
        %405 = vst [vmem:[%s258 + $0x10] sm:$0xff] %v386
        %406 = vst [vmem:[%s258 + $0x18] sm:$0xff] %v389
        %407 = vst [vmem:[%s258 + $0x20] sm:$0xff] %v392
        %408 = vst [vmem:[%s258 + $0x28] sm:$0xff] %v395
        %409 = vst [vmem:[%s258 + $0x30] sm:$0xff] %v398
        %410 = vst [vmem:[%s258 + $0x38] sm:$0xff] %v401
        %s411 = sand.u32 %s87, 1
        %s412 = scalar_lea.sflag [#allocation4], %s411
        %s413 = sand.u32 %s87, 1
        %s414 = smul.addr %s413, 64
        %s415 = scalar_lea.vmem [#allocation3], %s414
        // Predicated region
        $region67: #{tpu_custom_call.1} parent=61 // pred_check
          %p416 = pneg %p97
        $region68: #{tpu_custom_call.1} parent=61 // pred_check_branch
          %418 = sbr.rel (%p416) target = $region70
        $region69: #{tpu_custom_call.1} parent=61 // pred_region
          %420 = vsyncadd %s412, 0
          %s421 = smul.addr %s20, 16
          %s422 = sadd.s32 %s21, %s421
          %s423 = smul.addr %s422, 8
          %s424 = scalar_lea.hbm %s2, %s423
          %s425 = sshll.u32 %s415, 4
          %s426 = int_to_ptr.vmem [resolvable:$true] %s425
          %s427 = sshll.u32 %s424, 4
          %s428 = int_to_ptr.hbm [resolvable:$true] %s427
          %433 = dma.vmem_to_hbm [thread:$0]  %s426, 1024, %s428, %s412, 128, 256, 8
        $region70: #{tpu_custom_call.1} parent=61 // pred_fallthru
          _
      $region62: #{tpu_custom_call.1} parent=5 // pred_fallthru
        _
      %p434 = scmp.le.s32.totalorder 2, %s11
      // Predicated region
      $region71: #{tpu_custom_call.1} parent=5 // pred_check
        %p435 = pneg %p434
      $region72: #{tpu_custom_call.1} parent=5 // pred_check_branch
        %437 = sbr.rel (%p435) target = $region74
      $region73: #{tpu_custom_call.1} parent=5 // pred_region
        %s438 = ssub.s32 %s11, 2
        // Predicated region
        $region75: #{tpu_custom_call.1} parent=73 // pred_check
          %p439 = pneg %p103
        $region76: #{tpu_custom_call.1} parent=73 // pred_check_branch
          %441 = sbr.rel (%p439) target = $region78
        $region77: #{tpu_custom_call.1} parent=73 // pred_region
          %s442 = sand.u32 %s88, 1
          %s443 = scalar_lea.sflag [#allocation4], %s442
          %s444 = sand.u32 %s88, 1
          %s445 = smul.addr %s444, 64
          %s446 = scalar_lea.vmem [#allocation3], %s445
          %448 = dma.done %s443, 1024
        $region78: #{tpu_custom_call.1} parent=73 // pred_fallthru
          _
      $region74: #{tpu_custom_call.1} parent=5 // pred_fallthru
        _
    $region6: #{tpu_custom_call.1} parent=1 // loop_footer
      %s15 = sadd.s32 1, %s11
    $region7: #{tpu_custom_call.1} parent=1 // loop_footer_branch
      %10 = sbr.rel target = $region3
    $region8: #{tpu_custom_call.1} parent=1 // loop_exit
      _
    %449 = vsyncpa [#allocation4], 1
    %s450 = scalar_lea.sflag [#allocation4], 1
    %451 = vsyncpa %s450, 1

</llo_original>
